<compile_context>
chip_gen: v7x
topology: tpu7x:2x2x1
jax: 0.10.0
libtpu: 0.0.40
codegen_flags: <defaults>
</compile_context>

<pallas_src>
import functools

import jax
import jax.numpy as jnp
from jax.experimental import pallas as pl
from jax.experimental.pallas import tpu as pltpu

IN_FEAT = 32
HID_DIM = 128
H64 = 64
H16 = 16
OUT = 2
OUT_PAD = 128          # lane-dense output slab; real logits live in [:, :OUT]
MAX_TB = 1024          # batch-tile cap; VMEM-safe on v5e / v6e / v7x


def _round_up(n, m):
    return ((n + m - 1) // m) * m


def mlp_kernel(x_ref, we_ref, be_ref, w1_ref, b1_ref, w2_ref, b2_ref,
               w3t_ref, w3b_ref, b3_ref, wp_ref, bp_ref, out_ref):
    f32 = jnp.float32
    x = x_ref[...]

    # encode -> ReLU                                  (tb, 32) @ (32, 128)
    h0 = jnp.dot(x.astype(we_ref.dtype), we_ref[...],
                 preferred_element_type=f32) + be_ref[...]
    h0 = jnp.maximum(h0, 0.0)

    # hidden1 -> ReLU                                 (tb, 128) @ (128, 64)
    h1 = jnp.dot(h0.astype(w1_ref.dtype), w1_ref[...],
                 preferred_element_type=f32) + b1_ref[...]
    h1 = jnp.maximum(h1, 0.0)

    # hidden2 -> ReLU                                 (tb, 64) @ (64, 64)
    h1 = jnp.dot(h1.astype(w2_ref.dtype), w2_ref[...],
                 preferred_element_type=f32) + b2_ref[...]
    h1 = jnp.maximum(h1, 0.0)

    # dropout(concat([h0, h1])) -> hidden3 -> ReLU.
    # Concat is eliminated: w3 was split into its top 128 rows (h0 part) and
    # bottom 64 rows (h1 part); the two matmuls accumulate in f32.
    # TODO(synk): training-mode dropout (bernoulli mask + 1/(1-p) scale) not
    # implemented; eval-mode (identity) semantics used.
    h = (jnp.dot(h0.astype(w3t_ref.dtype), w3t_ref[...], preferred_element_type=f32)
         + jnp.dot(h1.astype(w3b_ref.dtype), w3b_ref[...], preferred_element_type=f32)
         + b3_ref[...])
    h = jnp.maximum(h, 0.0)

    # pred layer; wp/bp are zero-padded to 128 output lanes in the wrapper so
    # this store is a full unmasked lane-dense slab.
    out_ref[...] = (jnp.dot(h.astype(wp_ref.dtype), wp_ref[...],
                            preferred_element_type=f32)
                    + bp_ref[...]).astype(out_ref.dtype)


@functools.partial(jax.jit, static_argnames=("max_tb", "param_dtype"))
def my_model_pallas(x, params, max_tb=MAX_TB, param_dtype=jnp.float32):
    (we, be, w1, b1, w2, b2, w3, b3, wp, bp) = params
    B = x.shape[0]

    # Batch tile: as tall as possible (up to max_tb), multiple of 8.
    tb = min(max_tb, _round_up(B, 8))
    b_pad = _round_up(B, tb)
    if b_pad != B:
        x = jnp.pad(x, ((0, b_pad - B), (0, 0)))

    # Split hidden3 weight to remove the in-kernel lane-axis concat.
    w3t = w3[:HID_DIM]        # (128, 16)  multiplies h0
    w3b = w3[HID_DIM:]        # (64, 16)   multiplies h1

    # Zero-pad pred layer to a lane-dense 128-wide output slab.
    wp_pad = jnp.pad(wp, ((0, 0), (0, OUT_PAD - OUT)))
    bp_pad = jnp.pad(bp, ((0, 0), (0, OUT_PAD - OUT)))

    # Optional bf16 weights (f32 accumulation in the kernel); biases stay f32.
    cast = lambda w: w.astype(param_dtype)
    we, w1, w2, w3t, w3b, wp_pad = map(cast, (we, w1, w2, w3t, w3b, wp_pad))

    # ~80 KB of weights: keep them resident in VMEM, no pipeline buffers.
    resident = pl.BlockSpec(memory_space=pltpu.MemorySpace.VMEM)

    out = pl.pallas_call(
        mlp_kernel,
        out_shape=jax.ShapeDtypeStruct((b_pad, OUT_PAD), jnp.float32),
        grid=(b_pad // tb,),
        in_specs=[
            pl.BlockSpec((tb, IN_FEAT), lambda i: (i, 0)),   # x tile (pipelined)
            resident, resident,                               # encode
            resident, resident,                               # hidden1
            resident, resident,                               # hidden2
            resident, resident, resident,                     # hidden3 (split)
            resident, resident,                               # pred (padded)
        ],
        out_specs=pl.BlockSpec((tb, OUT_PAD), lambda i: (i, 0)),
        compiler_params=pltpu.CompilerParams(
            dimension_semantics=("parallel",)),
    )(x, we, be, w1, b1, w2, b2, w3t, w3b, b3, wp_pad, bp_pad)

    return out[:B, :OUT]


def init_params(key, in_feat=IN_FEAT, hid_dim=HID_DIM):
    """Deterministic init mimicking nn.Linear default (uniform +/- 1/sqrt(fan_in)).
    Weights stored as [in, out] (transposed vs PyTorch's [out, in])."""
    def linear(k, fan_in, fan_out):
        kw, kb = jax.random.split(k)
        bound = 1.0 / jnp.sqrt(fan_in)
        w = jax.random.uniform(kw, (fan_in, fan_out), jnp.float32, -bound, bound)
        b = jax.random.uniform(kb, (1, fan_out), jnp.float32, -bound, bound)
        return w, b

    keys = jax.random.split(key, 5)
    we, be = linear(keys[0], in_feat, hid_dim)          # encode
    w1, b1 = linear(keys[1], hid_dim, H64)              # hidden1
    w2, b2 = linear(keys[2], H64, H64)                  # hidden2
    w3, b3 = linear(keys[3], H64 + hid_dim, H16)        # hidden3
    wp, bp = linear(keys[4], H16, OUT)                  # pred
    return (we, be, w1, b1, w2, b2, w3, b3, wp, bp)


def reference_forward(x, params):
    (we, be, w1, b1, w2, b2, w3, b3, wp, bp) = params
    relu = lambda v: jnp.maximum(v, 0.0)
    h0 = relu(x @ we + be)
    h1 = relu(relu(h0 @ w1 + b1) @ w2 + b2)
    h = jnp.concatenate([h0, h1], axis=-1)
    h = relu(h @ w3 + b3)
    return h @ wp + bp


if __name__ == "__main__":
    key = jax.random.PRNGKey(0)
    kx, kp = jax.random.split(key)

    batch = 16
    x = jax.random.normal(kx, (batch, IN_FEAT), jnp.float32)
    params = init_params(kp)

    # f32 path: exact (to tolerance) match vs reference.
    out = jax.block_until_ready(my_model_pallas(x, params))
    ref = reference_forward(x, params)
    assert out.shape == (batch, OUT)
    assert jnp.allclose(out, ref, atol=1e-4, rtol=1e-4), "mismatch vs reference (f32)"

    # bf16-weight path (MXU-friendly on v6e/v7x); looser tolerance.
    out_bf16 = jax.block_until_ready(
        my_model_pallas(x, params, param_dtype=jnp.bfloat16))
    assert jnp.allclose(out_bf16, ref, atol=1e-1, rtol=1e-1), "mismatch vs reference (bf16)"

    # Batch not divisible by 8 — exercises the padding path.
    x2 = jax.random.normal(kx, (13, IN_FEAT), jnp.float32)
    out2 = jax.block_until_ready(my_model_pallas(x2, params))
    assert jnp.allclose(out2, reference_forward(x2, params), atol=1e-4, rtol=1e-4), \
        "mismatch vs reference (ragged batch)"

    print("KERNEL_OK")
</pallas_src>

<mosaic_0001>
module attributes {stable_mosaic.version = 11 : i64} {
  func.func @mlp_kernel(%arg0: i32, %arg1: memref<16x32xf32, #tpu.memory_space<vmem>>, %arg2: memref<32x128xf32, #tpu.memory_space<vmem>>, %arg3: memref<1x128xf32, #tpu.memory_space<vmem>>, %arg4: memref<128x64xf32, #tpu.memory_space<vmem>>, %arg5: memref<1x64xf32, #tpu.memory_space<vmem>>, %arg6: memref<64x64xf32, #tpu.memory_space<vmem>>, %arg7: memref<1x64xf32, #tpu.memory_space<vmem>>, %arg8: memref<128x16xf32, #tpu.memory_space<vmem>>, %arg9: memref<64x16xf32, #tpu.memory_space<vmem>>, %arg10: memref<1x16xf32, #tpu.memory_space<vmem>>, %arg11: memref<16x128xf32, #tpu.memory_space<vmem>>, %arg12: memref<1x128xf32, #tpu.memory_space<vmem>>, %arg13: memref<16x128xf32, #tpu.memory_space<vmem>>) attributes {dimension_semantics = [#tpu.dimension_semantics<parallel>], iteration_bounds = array<i64: 1>, scalar_prefetch = 0 : i64, scratch_operands = 0 : i64, tpu.core_type = #tpu.core_type<tc>, window_params = [{transform_indices = @transform_0, window_bounds = array<i64: 16, 32>}, {pipeline_mode = #tpu.pipeline_mode<synchronous>, transform_indices = @transform_1, window_bounds = array<i64: 32, 128>}, {pipeline_mode = #tpu.pipeline_mode<synchronous>, transform_indices = @transform_2, window_bounds = array<i64: 1, 128>}, {pipeline_mode = #tpu.pipeline_mode<synchronous>, transform_indices = @transform_3, window_bounds = array<i64: 128, 64>}, {pipeline_mode = #tpu.pipeline_mode<synchronous>, transform_indices = @transform_4, window_bounds = array<i64: 1, 64>}, {pipeline_mode = #tpu.pipeline_mode<synchronous>, transform_indices = @transform_5, window_bounds = array<i64: 64, 64>}, {pipeline_mode = #tpu.pipeline_mode<synchronous>, transform_indices = @transform_6, window_bounds = array<i64: 1, 64>}, {pipeline_mode = #tpu.pipeline_mode<synchronous>, transform_indices = @transform_7, window_bounds = array<i64: 128, 16>}, {pipeline_mode = #tpu.pipeline_mode<synchronous>, transform_indices = @transform_8, window_bounds = array<i64: 64, 16>}, {pipeline_mode = #tpu.pipeline_mode<synchronous>, transform_indices = @transform_9, window_bounds = array<i64: 1, 16>}, {pipeline_mode = #tpu.pipeline_mode<synchronous>, transform_indices = @transform_10, window_bounds = array<i64: 16, 128>}, {pipeline_mode = #tpu.pipeline_mode<synchronous>, transform_indices = @transform_11, window_bounds = array<i64: 1, 128>}, {transform_indices = @transform_12, window_bounds = array<i64: 16, 128>}]} {
    %c0 = arith.constant 0 : index
    %c0_0 = arith.constant 0 : index
    %0 = vector.load %arg1[%c0, %c0_0] : memref<16x32xf32, #tpu.memory_space<vmem>>, vector<16x32xf32>
    %c0_1 = arith.constant 0 : index
    %c0_2 = arith.constant 0 : index
    %1 = vector.load %arg2[%c0_1, %c0_2] : memref<32x128xf32, #tpu.memory_space<vmem>>, vector<32x128xf32>
    %cst = arith.constant dense<0.000000e+00> : vector<16x128xf32>
    %2 = tpu.matmul %0, %1, %cst {dimension_numbers = #tpu.dot_dimension_numbers<[1], [0], [0], [1], [0, 0, 1, 1], [], []>} : vector<16x32xf32>, vector<32x128xf32>, vector<16x128xf32> -> vector<16x128xf32>
    %c0_3 = arith.constant 0 : index
    %c0_4 = arith.constant 0 : index
    %3 = vector.load %arg3[%c0_3, %c0_4] : memref<1x128xf32, #tpu.memory_space<vmem>>, vector<1x128xf32>
    %4 = vector.broadcast %3 : vector<1x128xf32> to vector<16x128xf32>
    %5 = arith.addf %2, %4 : vector<16x128xf32>
    %cst_5 = arith.constant 0.000000e+00 : f32
    %6 = vector.broadcast %cst_5 : f32 to vector<16x128xf32>
    %7 = arith.maximumf %5, %6 : vector<16x128xf32>
    %c0_6 = arith.constant 0 : index
    %c0_7 = arith.constant 0 : index
    %8 = vector.load %arg4[%c0_6, %c0_7] : memref<128x64xf32, #tpu.memory_space<vmem>>, vector<128x64xf32>
    %cst_8 = arith.constant dense<0.000000e+00> : vector<16x64xf32>
    %9 = tpu.matmul %7, %8, %cst_8 {dimension_numbers = #tpu.dot_dimension_numbers<[1], [0], [0], [1], [0, 0, 1, 1], [], []>} : vector<16x128xf32>, vector<128x64xf32>, vector<16x64xf32> -> vector<16x64xf32>
    %c0_9 = arith.constant 0 : index
    %c0_10 = arith.constant 0 : index
    %10 = vector.load %arg5[%c0_9, %c0_10] : memref<1x64xf32, #tpu.memory_space<vmem>>, vector<1x64xf32>
    %11 = vector.broadcast %10 : vector<1x64xf32> to vector<16x64xf32>
    %12 = arith.addf %9, %11 : vector<16x64xf32>
    %cst_11 = arith.constant 0.000000e+00 : f32
    %13 = vector.broadcast %cst_11 : f32 to vector<16x64xf32>
    %14 = arith.maximumf %12, %13 : vector<16x64xf32>
    %c0_12 = arith.constant 0 : index
    %c0_13 = arith.constant 0 : index
    %15 = vector.load %arg6[%c0_12, %c0_13] : memref<64x64xf32, #tpu.memory_space<vmem>>, vector<64x64xf32>
    %cst_14 = arith.constant dense<0.000000e+00> : vector<16x64xf32>
    %16 = tpu.matmul %14, %15, %cst_14 {dimension_numbers = #tpu.dot_dimension_numbers<[1], [0], [0], [1], [0, 0, 1, 1], [], []>} : vector<16x64xf32>, vector<64x64xf32>, vector<16x64xf32> -> vector<16x64xf32>
    %c0_15 = arith.constant 0 : index
    %c0_16 = arith.constant 0 : index
    %17 = vector.load %arg7[%c0_15, %c0_16] : memref<1x64xf32, #tpu.memory_space<vmem>>, vector<1x64xf32>
    %18 = vector.broadcast %17 : vector<1x64xf32> to vector<16x64xf32>
    %19 = arith.addf %16, %18 : vector<16x64xf32>
    %cst_17 = arith.constant 0.000000e+00 : f32
    %20 = vector.broadcast %cst_17 : f32 to vector<16x64xf32>
    %21 = arith.maximumf %19, %20 : vector<16x64xf32>
    %c0_18 = arith.constant 0 : index
    %c0_19 = arith.constant 0 : index
    %22 = vector.load %arg8[%c0_18, %c0_19] : memref<128x16xf32, #tpu.memory_space<vmem>>, vector<128x16xf32>
    %cst_20 = arith.constant dense<0.000000e+00> : vector<16x16xf32>
    %23 = tpu.matmul %7, %22, %cst_20 {dimension_numbers = #tpu.dot_dimension_numbers<[1], [0], [0], [1], [0, 0, 1, 1], [], []>} : vector<16x128xf32>, vector<128x16xf32>, vector<16x16xf32> -> vector<16x16xf32>
    %c0_21 = arith.constant 0 : index
    %c0_22 = arith.constant 0 : index
    %24 = vector.load %arg9[%c0_21, %c0_22] : memref<64x16xf32, #tpu.memory_space<vmem>>, vector<64x16xf32>
    %cst_23 = arith.constant dense<0.000000e+00> : vector<16x16xf32>
    %25 = tpu.matmul %21, %24, %cst_23 {dimension_numbers = #tpu.dot_dimension_numbers<[1], [0], [0], [1], [0, 0, 1, 1], [], []>} : vector<16x64xf32>, vector<64x16xf32>, vector<16x16xf32> -> vector<16x16xf32>
    %26 = arith.addf %23, %25 : vector<16x16xf32>
    %c0_24 = arith.constant 0 : index
    %c0_25 = arith.constant 0 : index
    %27 = vector.load %arg10[%c0_24, %c0_25] : memref<1x16xf32, #tpu.memory_space<vmem>>, vector<1x16xf32>
    %28 = vector.broadcast %27 : vector<1x16xf32> to vector<16x16xf32>
    %29 = arith.addf %26, %28 : vector<16x16xf32>
    %cst_26 = arith.constant 0.000000e+00 : f32
    %30 = vector.broadcast %cst_26 : f32 to vector<16x16xf32>
    %31 = arith.maximumf %29, %30 : vector<16x16xf32>
    %c0_27 = arith.constant 0 : index
    %c0_28 = arith.constant 0 : index
    %32 = vector.load %arg11[%c0_27, %c0_28] : memref<16x128xf32, #tpu.memory_space<vmem>>, vector<16x128xf32>
    %cst_29 = arith.constant dense<0.000000e+00> : vector<16x128xf32>
    %33 = tpu.matmul %31, %32, %cst_29 {dimension_numbers = #tpu.dot_dimension_numbers<[1], [0], [0], [1], [0, 0, 1, 1], [], []>} : vector<16x16xf32>, vector<16x128xf32>, vector<16x128xf32> -> vector<16x128xf32>
    %c0_30 = arith.constant 0 : index
    %c0_31 = arith.constant 0 : index
    %34 = vector.load %arg12[%c0_30, %c0_31] : memref<1x128xf32, #tpu.memory_space<vmem>>, vector<1x128xf32>
    %35 = vector.broadcast %34 : vector<1x128xf32> to vector<16x128xf32>
    %36 = arith.addf %33, %35 : vector<16x128xf32>
    %c0_32 = arith.constant 0 : index
    %c0_33 = arith.constant 0 : index
    %37 = vector.load %arg13[%c0_32, %c0_33] : memref<16x128xf32, #tpu.memory_space<vmem>>, vector<16x128xf32>
    tpu.vector_store %arg13[%c0_32, %c0_33], %36 {strides = array<i32>} : memref<16x128xf32, #tpu.memory_space<vmem>>, vector<16x128xf32>,
    return
  }
  func.func @transform_0(%arg0: i32) -> (i32, i32) {
    %c0_i32 = arith.constant 0 : i32
    %c0_i32_0 = arith.constant 0 : i32
    return %arg0, %c0_i32 : i32, i32
  }
  func.func @transform_1(%arg0: i32) -> (i32, i32) {
    %c0_i32 = arith.constant 0 : i32
    %c0_i32_0 = arith.constant 0 : i32
    %c0_i32_1 = arith.constant 0 : i32
    return %c0_i32, %c0_i32_0 : i32, i32
  }
  func.func @transform_2(%arg0: i32) -> (i32, i32) {
    %c0_i32 = arith.constant 0 : i32
    %c0_i32_0 = arith.constant 0 : i32
    %c0_i32_1 = arith.constant 0 : i32
    return %c0_i32, %c0_i32_0 : i32, i32
  }
  func.func @transform_3(%arg0: i32) -> (i32, i32) {
    %c0_i32 = arith.constant 0 : i32
    %c0_i32_0 = arith.constant 0 : i32
    %c0_i32_1 = arith.constant 0 : i32
    return %c0_i32, %c0_i32_0 : i32, i32
  }
  func.func @transform_4(%arg0: i32) -> (i32, i32) {
    %c0_i32 = arith.constant 0 : i32
    %c0_i32_0 = arith.constant 0 : i32
    %c0_i32_1 = arith.constant 0 : i32
    return %c0_i32, %c0_i32_0 : i32, i32
  }
  func.func @transform_5(%arg0: i32) -> (i32, i32) {
    %c0_i32 = arith.constant 0 : i32
    %c0_i32_0 = arith.constant 0 : i32
    %c0_i32_1 = arith.constant 0 : i32
    return %c0_i32, %c0_i32_0 : i32, i32
  }
  func.func @transform_6(%arg0: i32) -> (i32, i32) {
    %c0_i32 = arith.constant 0 : i32
    %c0_i32_0 = arith.constant 0 : i32
    %c0_i32_1 = arith.constant 0 : i32
    return %c0_i32, %c0_i32_0 : i32, i32
  }
  func.func @transform_7(%arg0: i32) -> (i32, i32) {
    %c0_i32 = arith.constant 0 : i32
    %c0_i32_0 = arith.constant 0 : i32
    %c0_i32_1 = arith.constant 0 : i32
    return %c0_i32, %c0_i32_0 : i32, i32
  }
  func.func @transform_8(%arg0: i32) -> (i32, i32) {
    %c0_i32 = arith.constant 0 : i32
    %c0_i32_0 = arith.constant 0 : i32
    %c0_i32_1 = arith.constant 0 : i32
    return %c0_i32, %c0_i32_0 : i32, i32
  }
  func.func @transform_9(%arg0: i32) -> (i32, i32) {
    %c0_i32 = arith.constant 0 : i32
    %c0_i32_0 = arith.constant 0 : i32
    %c0_i32_1 = arith.constant 0 : i32
    return %c0_i32, %c0_i32_0 : i32, i32
  }
  func.func @transform_10(%arg0: i32) -> (i32, i32) {
    %c0_i32 = arith.constant 0 : i32
    %c0_i32_0 = arith.constant 0 : i32
    %c0_i32_1 = arith.constant 0 : i32
    return %c0_i32, %c0_i32_0 : i32, i32
  }
  func.func @transform_11(%arg0: i32) -> (i32, i32) {
    %c0_i32 = arith.constant 0 : i32
    %c0_i32_0 = arith.constant 0 : i32
    %c0_i32_1 = arith.constant 0 : i32
    return %c0_i32, %c0_i32_0 : i32, i32
  }
  func.func @transform_12(%arg0: i32) -> (i32, i32) {
    %c0_i32 = arith.constant 0 : i32
    %c0_i32_0 = arith.constant 0 : i32
    return %arg0, %c0_i32 : i32, i32
  }
}

</mosaic_0001>

<llo_original>
// kernel: my_model_pallas.1
$region0: #{my_model_pallas.1}
  #allocation0 [shape = 'u32[]', space=smem, size = 0x4, offset = 0x4, fixed_abs, tag = 'smem constant byte address 0x4 - core index']
  #allocation1 [shape = 'u32[144,128]{1,0:T(1,128)}', space=vmem, size = 0x12000, scoped, tag = 'internal scratch']
  %s0 = inlined_call_operand.vmem [shape: f32[16,32], index: 0, kind: input, shape index: {}]
  %s1 = inlined_call_operand.vmem [shape: f32[32,128], index: 1, kind: input, shape index: {}]
  %s2 = inlined_call_operand.vmem [shape: f32[1,128], index: 2, kind: input, shape index: {}]
  %s3 = inlined_call_operand.vmem [shape: f32[128,64], index: 3, kind: input, shape index: {}]
  %s4 = inlined_call_operand.vmem [shape: f32[1,64], index: 4, kind: input, shape index: {}]
  %s5 = inlined_call_operand.vmem [shape: f32[64,64], index: 5, kind: input, shape index: {}]
  %s6 = inlined_call_operand.vmem [shape: f32[1,64], index: 6, kind: input, shape index: {}]
  %s7 = inlined_call_operand.vmem [shape: f32[128,16], index: 7, kind: input, shape index: {}]
  %s8 = inlined_call_operand.vmem [shape: f32[64,16], index: 8, kind: input, shape index: {}]
  %s9 = inlined_call_operand.vmem [shape: f32[1,16], index: 9, kind: input, shape index: {}]
  %s10 = inlined_call_operand.vmem [shape: f32[16,128], index: 10, kind: input, shape index: {}]
  %s11 = inlined_call_operand.vmem [shape: f32[1,128], index: 11, kind: input, shape index: {}]
  %s12 = inlined_call_operand.vmem [shape: f32[16,128], index: 12, kind: output, shape index: {}]
  %s13 = sld [smem:[#allocation0]]
  $region58: #{my_model_pallas.1} parent=0
    _
  %s15 = ssub.s32 1, %s13
  %s16 = scalar_select 0, %s15, %s13
  // Predicated region
  $region2: #{my_model_pallas.1} parent=0 // pred_check
    _
  $region3: #{my_model_pallas.1} parent=0 // pred_check_branch
    %18 = sbr.rel (0) target = $region5
  $region4: #{my_model_pallas.1} parent=0 // pred_region
    _
  $region5: #{my_model_pallas.1} parent=0 // pred_fallthru
    _
  // Predicated region
  $region6: #{my_model_pallas.1} parent=0 // pred_check
    _
  $region7: #{my_model_pallas.1} parent=0 // pred_check_branch
    %20 = sbr.rel (0) target = $region9
  $region8: #{my_model_pallas.1} parent=0 // pred_region
    _
  $region9: #{my_model_pallas.1} parent=0 // pred_fallthru
    _
  // Predicated region
  $region10: #{my_model_pallas.1} parent=0 // pred_check
    _
  $region11: #{my_model_pallas.1} parent=0 // pred_check_branch
    %22 = sbr.rel (0) target = $region13
  $region12: #{my_model_pallas.1} parent=0 // pred_region
    _
  $region13: #{my_model_pallas.1} parent=0 // pred_fallthru
    _
  // Predicated region
  $region14: #{my_model_pallas.1} parent=0 // pred_check
    _
  $region15: #{my_model_pallas.1} parent=0 // pred_check_branch
    %24 = sbr.rel (0) target = $region17
  $region16: #{my_model_pallas.1} parent=0 // pred_region
    _
  $region17: #{my_model_pallas.1} parent=0 // pred_fallthru
    _
  // Predicated region
  $region18: #{my_model_pallas.1} parent=0 // pred_check
    _
  $region19: #{my_model_pallas.1} parent=0 // pred_check_branch
    %26 = sbr.rel (0) target = $region21
  $region20: #{my_model_pallas.1} parent=0 // pred_region
    _
  $region21: #{my_model_pallas.1} parent=0 // pred_fallthru
    _
  // Predicated region
  $region22: #{my_model_pallas.1} parent=0 // pred_check
    _
  $region23: #{my_model_pallas.1} parent=0 // pred_check_branch
    %28 = sbr.rel (0) target = $region25
  $region24: #{my_model_pallas.1} parent=0 // pred_region
    _
  $region25: #{my_model_pallas.1} parent=0 // pred_fallthru
    _
  // Predicated region
  $region26: #{my_model_pallas.1} parent=0 // pred_check
    _
  $region27: #{my_model_pallas.1} parent=0 // pred_check_branch
    %30 = sbr.rel (0) target = $region29
  $region28: #{my_model_pallas.1} parent=0 // pred_region
    _
  $region29: #{my_model_pallas.1} parent=0 // pred_fallthru
    _
  // Predicated region
  $region30: #{my_model_pallas.1} parent=0 // pred_check
    _
  $region31: #{my_model_pallas.1} parent=0 // pred_check_branch
    %32 = sbr.rel (0) target = $region33
  $region32: #{my_model_pallas.1} parent=0 // pred_region
    _
  $region33: #{my_model_pallas.1} parent=0 // pred_fallthru
    _
  // Predicated region
  $region34: #{my_model_pallas.1} parent=0 // pred_check
    _
  $region35: #{my_model_pallas.1} parent=0 // pred_check_branch
    %34 = sbr.rel (0) target = $region37
  $region36: #{my_model_pallas.1} parent=0 // pred_region
    _
  $region37: #{my_model_pallas.1} parent=0 // pred_fallthru
    _
  // Predicated region
  $region38: #{my_model_pallas.1} parent=0 // pred_check
    _
  $region39: #{my_model_pallas.1} parent=0 // pred_check_branch
    %36 = sbr.rel (0) target = $region41
  $region40: #{my_model_pallas.1} parent=0 // pred_region
    _
  $region41: #{my_model_pallas.1} parent=0 // pred_fallthru
    _
  // Predicated region
  $region42: #{my_model_pallas.1} parent=0 // pred_check
    _
  $region43: #{my_model_pallas.1} parent=0 // pred_check_branch
    %38 = sbr.rel (0) target = $region45
  $region44: #{my_model_pallas.1} parent=0 // pred_region
    _
  $region45: #{my_model_pallas.1} parent=0 // pred_fallthru
    _
  // Predicated region
  $region46: #{my_model_pallas.1} parent=0 // pred_check
    _
  $region47: #{my_model_pallas.1} parent=0 // pred_check_branch
    %40 = sbr.rel (0) target = $region49
  $region48: #{my_model_pallas.1} parent=0 // pred_region
    _
  $region49: #{my_model_pallas.1} parent=0 // pred_fallthru
    _
  %v41 = vld [vmem:[%s0] sm:$0xff]
  %v42 = vld [vmem:[%s0 + $0x8] sm:$0xff]
  %v43 = vld [vmem:[%s1] sm:$0xff]
  %v44 = vld [vmem:[%s1 + $0x8] sm:$0xff]
  %v45 = vld [vmem:[%s1 + $0x10] sm:$0xff]
  %v46 = vld [vmem:[%s1 + $0x18] sm:$0xff]
  %v47 = vld [vmem:[%s2] sm:$0x1]
  %v49 = vlaneseq
  %v50 = vshrl.u32 %v49, 7
  %v51 = vsub.s32 0, %v50
  %v52 = vrot.slane %v47, %v51
  %vm54 = vcmask 261120
  %v56 = vsel %vm54, %v41, 0
  %v59 = vsel %vm54, %v42, 0
  %61 = vmatprep.subr.mxu0 0.0
  %62 = vmatpush1.msra.mxu0 %v43
  %63 = vmatprep.subr.mxu0 0.0
  %64 = vmatpush1.msra.mxu0 %v44
  %65 = vmatprep.subr.mxu0 0.0
  %66 = vmatpush1.msra.mxu0 %v45
  %67 = vmatprep.subr.mxu0 0.0
  %68 = vmatpush1.msra.mxu0 %v46
  %69 = vmatprep.subr.mxu0 0.0
  %70 = vmatpush1.msra.mxu0 0.0
  %71 = vmatprep.subr.mxu0 0.0
  %72 = vmatpush1.msra.mxu0 0.0
  %73 = vmatprep.subr.mxu0 0.0
  %74 = vmatpush1.msra.mxu0 0.0
  %75 = vmatprep.subr.mxu0 0.0
  %76 = vmatpush1.msra.mxu0 0.0
  %77 = vmatprep.subr.mxu0 0.0
  %78 = vmatpush1.msra.mxu0 0.0
  %79 = vmatprep.subr.mxu0 0.0
  %80 = vmatpush1.msra.mxu0 0.0
  %81 = vmatprep.subr.mxu0 0.0
  %82 = vmatpush1.msra.mxu0 0.0
  %83 = vmatprep.subr.mxu0 0.0
  %84 = vmatpush1.msra.mxu0 0.0
  %85 = vmatprep.subr.mxu0 0.0
  %86 = vmatpush1.msra.mxu0 0.0
  %87 = vmatprep.subr.mxu0 0.0
  %88 = vmatpush1.msra.mxu0 0.0
  %89 = vmatprep.subr.mxu0 0.0
  %90 = vmatpush1.msra.mxu0 0.0
  %91 = vmatprep.subr.mxu0 0.0
  %92 = vmatpush1.msra.mxu0 0.0
  %93 = vmatprep.subr.mxu0 0.0
  %94 = vmatpush1.msra.mxu0 0.0
  %95 = vmatprep.subr.mxu0 0.0
  %96 = vmatpush1.msra.mxu0 0.0
  %97 = vmatprep.subr.mxu0 0.0
  %98 = vmatpush1.msra.mxu0 0.0
  %99 = vmatprep.subr.mxu0 0.0
  %100 = vmatpush1.msra.mxu0 0.0
  %101 = vmatprep.subr.mxu0 0.0
  %102 = vmatpush1.msra.mxu0 0.0
  %103 = vmatprep.subr.mxu0 0.0
  %104 = vmatpush1.msra.mxu0 0.0
  %105 = vmatprep.subr.mxu0 0.0
  %106 = vmatpush1.msra.mxu0 0.0
  %107 = vmatprep.subr.mxu0 0.0
  %108 = vmatpush1.msra.mxu0 0.0
  %109 = vmatprep.subr.mxu0 0.0
  %110 = vmatpush1.msra.mxu0 0.0
  %111 = vmatprep.subr.mxu0 0.0
  %112 = vmatpush1.msra.mxu0 0.0
  %113 = vmatprep.subr.mxu0 0.0
  %114 = vmatpush1.msra.mxu0 0.0
  %115 = vmatprep.subr.mxu0 0.0
  %116 = vmatpush1.msra.mxu0 0.0
  %117 = vmatprep.subr.mxu0 0.0
  %118 = vmatpush1.msra.mxu0 0.0
  %119 = vmatprep.subr.mxu0 0.0
  %120 = vmatpush1.msra.mxu0 0.0
  %121 = vmatprep.subr.mxu0 0.0
  %122 = vmatpush1.msra.mxu0 0.0
  %123 = vmatprep.subr.mxu0 0.0
  %124 = vmatpush1.msra.mxu0 0.0
  %125 = vmatprep.mubr.f32.mxu0 0.0
  %126 = vmatmul.mubr.f32.gmra.mrb[0].mxu0 %v56
  %v127 = vpop.f32.mrb[0].mxu0
  %v128 = vadd.f32 %v52, %v127
  %v129 = vpop.f32.mrb[0].mxu0
  %130 = vmatprep.mubr.f32.mxu0 0.0
  %131 = vmatmul.mubr.f32.gmra.mrb[0].mxu0 %v59
  %v132 = vpop.f32.mrb[0].mxu0
  %v133 = vadd.f32 %v52, %v132
  %v134 = vpop.f32.mrb[0].mxu0
  %135 = vdwg.mxu0
  %v136 = vmax.f32 %v128, 0.0
  %v137 = vmax.f32 %v133, 0.0
  %v138 = vld [vmem:[%s3] sm:$0xff]
  %v139 = vld [vmem:[%s3 + $0x8] sm:$0xff]
  %v140 = vld [vmem:[%s3 + $0x10] sm:$0xff]
  %v141 = vld [vmem:[%s3 + $0x18] sm:$0xff]
  %v142 = vld [vmem:[%s3 + $0x20] sm:$0xff]
  %v143 = vld [vmem:[%s3 + $0x28] sm:$0xff]
  %v144 = vld [vmem:[%s3 + $0x30] sm:$0xff]
  %v145 = vld [vmem:[%s3 + $0x38] sm:$0xff]
  %v146 = vld [vmem:[%s3 + $0x40] sm:$0xff]
  %v147 = vld [vmem:[%s3 + $0x48] sm:$0xff]
  %v148 = vld [vmem:[%s3 + $0x50] sm:$0xff]
  %v149 = vld [vmem:[%s3 + $0x58] sm:$0xff]
  %v150 = vld [vmem:[%s3 + $0x60] sm:$0xff]
  %v151 = vld [vmem:[%s3 + $0x68] sm:$0xff]
  %v152 = vld [vmem:[%s3 + $0x70] sm:$0xff]
  %v153 = vld [vmem:[%s3 + $0x78] sm:$0xff]
  %v154 = vld [vmem:[%s4] sm:$0x1]
  %v156 = vlaneseq
  %v157 = vshrl.u32 %v156, 7
  %v158 = vsub.s32 0, %v157
  %v159 = vrot.slane %v154, %v158
  %161 = vmatprep.subr.mxu0 0.0
  %162 = vmatpush1.msra.mxu0 %v138
  %163 = vmatprep.subr.mxu0 0.0
  %164 = vmatpush1.msra.mxu0 %v139
  %165 = vmatprep.subr.mxu0 0.0
  %166 = vmatpush1.msra.mxu0 %v140
  %167 = vmatprep.subr.mxu0 0.0
  %168 = vmatpush1.msra.mxu0 %v141
  %169 = vmatprep.subr.mxu0 0.0
  %170 = vmatpush1.msra.mxu0 %v142
  %171 = vmatprep.subr.mxu0 0.0
  %172 = vmatpush1.msra.mxu0 %v143
  %173 = vmatprep.subr.mxu0 0.0
  %174 = vmatpush1.msra.mxu0 %v144
  %175 = vmatprep.subr.mxu0 0.0
  %176 = vmatpush1.msra.mxu0 %v145
  %177 = vmatprep.subr.mxu0 0.0
  %178 = vmatpush1.msra.mxu0 %v146
  %179 = vmatprep.subr.mxu0 0.0
  %180 = vmatpush1.msra.mxu0 %v147
  %181 = vmatprep.subr.mxu0 0.0
  %182 = vmatpush1.msra.mxu0 %v148
  %183 = vmatprep.subr.mxu0 0.0
  %184 = vmatpush1.msra.mxu0 %v149
  %185 = vmatprep.subr.mxu0 0.0
  %186 = vmatpush1.msra.mxu0 %v150
  %187 = vmatprep.subr.mxu0 0.0
  %188 = vmatpush1.msra.mxu0 %v151
  %189 = vmatprep.subr.mxu0 0.0
  %190 = vmatpush1.msra.mxu0 %v152
  %191 = vmatprep.subr.mxu0 0.0
  %192 = vmatpush1.msra.mxu0 %v153
  %193 = vmatprep.subr.mxu0 0.0
  %194 = vmatpush1.msra.mxu0 0.0
  %195 = vmatprep.subr.mxu0 0.0
  %196 = vmatpush1.msra.mxu0 0.0
  %197 = vmatprep.subr.mxu0 0.0
  %198 = vmatpush1.msra.mxu0 0.0
  %199 = vmatprep.subr.mxu0 0.0
  %200 = vmatpush1.msra.mxu0 0.0
  %201 = vmatprep.subr.mxu0 0.0
  %202 = vmatpush1.msra.mxu0 0.0
  %203 = vmatprep.subr.mxu0 0.0
  %204 = vmatpush1.msra.mxu0 0.0
  %205 = vmatprep.subr.mxu0 0.0
  %206 = vmatpush1.msra.mxu0 0.0
  %207 = vmatprep.subr.mxu0 0.0
  %208 = vmatpush1.msra.mxu0 0.0
  %209 = vmatprep.subr.mxu0 0.0
  %210 = vmatpush1.msra.mxu0 0.0
  %211 = vmatprep.subr.mxu0 0.0
  %212 = vmatpush1.msra.mxu0 0.0
  %213 = vmatprep.subr.mxu0 0.0
  %214 = vmatpush1.msra.mxu0 0.0
  %215 = vmatprep.subr.mxu0 0.0
  %216 = vmatpush1.msra.mxu0 0.0
  %217 = vmatprep.subr.mxu0 0.0
  %218 = vmatpush1.msra.mxu0 0.0
  %219 = vmatprep.subr.mxu0 0.0
  %220 = vmatpush1.msra.mxu0 0.0
  %221 = vmatprep.subr.mxu0 0.0
  %222 = vmatpush1.msra.mxu0 0.0
  %223 = vmatprep.subr.mxu0 0.0
  %224 = vmatpush1.msra.mxu0 0.0
  %225 = vmatprep.mubr.f32.mxu0 0.0
  %226 = vmatmul.mubr.f32.gmra.mrb[0].mxu0 %v136
  %v227 = vpop.f32.mrb[0].mxu0
  %v228 = vadd.f32 %v159, %v227
  %v229 = vpop.f32.mrb[0].mxu0
  %230 = vmatprep.mubr.f32.mxu0 0.0
  %231 = vmatmul.mubr.f32.gmra.mrb[0].mxu0 %v137
  %v232 = vpop.f32.mrb[0].mxu0
  %v233 = vadd.f32 %v159, %v232
  %v234 = vpop.f32.mrb[0].mxu0
  %235 = vdwg.mxu0
  %v236 = vmax.f32 %v228, 0.0
  %v237 = vmax.f32 %v233, 0.0
  %v238 = vld [vmem:[%s5] sm:$0xff]
  %v239 = vld [vmem:[%s5 + $0x8] sm:$0xff]
  %v240 = vld [vmem:[%s5 + $0x10] sm:$0xff]
  %v241 = vld [vmem:[%s5 + $0x18] sm:$0xff]
  %v242 = vld [vmem:[%s5 + $0x20] sm:$0xff]
  %v243 = vld [vmem:[%s5 + $0x28] sm:$0xff]
  %v244 = vld [vmem:[%s5 + $0x30] sm:$0xff]
  %v245 = vld [vmem:[%s5 + $0x38] sm:$0xff]
  %v246 = vld [vmem:[%s6] sm:$0x1]
  %v248 = vlaneseq
  %v249 = vshrl.u32 %v248, 7
  %v250 = vsub.s32 0, %v249
  %v251 = vrot.slane %v246, %v250
  %vm253 = vcmask 523264
  %v255 = vsel %vm253, %v236, 0
  %v258 = vsel %vm253, %v237, 0
  %260 = vmatprep.subr.mxu0 0.0
  %261 = vmatpush1.msra.mxu0 %v238
  %262 = vmatprep.subr.mxu0 0.0
  %263 = vmatpush1.msra.mxu0 %v239
  %264 = vmatprep.subr.mxu0 0.0
  %265 = vmatpush1.msra.mxu0 %v240
  %266 = vmatprep.subr.mxu0 0.0
  %267 = vmatpush1.msra.mxu0 %v241
  %268 = vmatprep.subr.mxu0 0.0
  %269 = vmatpush1.msra.mxu0 %v242
  %270 = vmatprep.subr.mxu0 0.0
  %271 = vmatpush1.msra.mxu0 %v243
  %272 = vmatprep.subr.mxu0 0.0
  %273 = vmatpush1.msra.mxu0 %v244
  %274 = vmatprep.subr.mxu0 0.0
  %275 = vmatpush1.msra.mxu0 %v245
  %276 = vmatprep.subr.mxu0 0.0
  %277 = vmatpush1.msra.mxu0 0.0
  %278 = vmatprep.subr.mxu0 0.0
  %279 = vmatpush1.msra.mxu0 0.0
  %280 = vmatprep.subr.mxu0 0.0
  %281 = vmatpush1.msra.mxu0 0.0
  %282 = vmatprep.subr.mxu0 0.0
  %283 = vmatpush1.msra.mxu0 0.0
  %284 = vmatprep.subr.mxu0 0.0
  %285 = vmatpush1.msra.mxu0 0.0
  %286 = vmatprep.subr.mxu0 0.0
  %287 = vmatpush1.msra.mxu0 0.0
  %288 = vmatprep.subr.mxu0 0.0
  %289 = vmatpush1.msra.mxu0 0.0
  %290 = vmatprep.subr.mxu0 0.0
  %291 = vmatpush1.msra.mxu0 0.0
  %292 = vmatprep.subr.mxu0 0.0
  %293 = vmatpush1.msra.mxu0 0.0
  %294 = vmatprep.subr.mxu0 0.0
  %295 = vmatpush1.msra.mxu0 0.0
  %296 = vmatprep.subr.mxu0 0.0
  %297 = vmatpush1.msra.mxu0 0.0
  %298 = vmatprep.subr.mxu0 0.0
  %299 = vmatpush1.msra.mxu0 0.0
  %300 = vmatprep.subr.mxu0 0.0
  %301 = vmatpush1.msra.mxu0 0.0
  %302 = vmatprep.subr.mxu0 0.0
  %303 = vmatpush1.msra.mxu0 0.0
  %304 = vmatprep.subr.mxu0 0.0
  %305 = vmatpush1.msra.mxu0 0.0
  %306 = vmatprep.subr.mxu0 0.0
  %307 = vmatpush1.msra.mxu0 0.0
  %308 = vmatprep.subr.mxu0 0.0
  %309 = vmatpush1.msra.mxu0 0.0
  %310 = vmatprep.subr.mxu0 0.0
  %311 = vmatpush1.msra.mxu0 0.0
  %312 = vmatprep.subr.mxu0 0.0
  %313 = vmatpush1.msra.mxu0 0.0
  %314 = vmatprep.subr.mxu0 0.0
  %315 = vmatpush1.msra.mxu0 0.0
  %316 = vmatprep.subr.mxu0 0.0
  %317 = vmatpush1.msra.mxu0 0.0
  %318 = vmatprep.subr.mxu0 0.0
  %319 = vmatpush1.msra.mxu0 0.0
  %320 = vmatprep.subr.mxu0 0.0
  %321 = vmatpush1.msra.mxu0 0.0
  %322 = vmatprep.subr.mxu0 0.0
  %323 = vmatpush1.msra.mxu0 0.0
  %324 = vmatprep.mubr.f32.mxu0 0.0
  %325 = vmatmul.mubr.f32.gmra.mrb[0].mxu0 %v255
  %v326 = vpop.f32.mrb[0].mxu0
  %v327 = vadd.f32 %v251, %v326
  %v328 = vpop.f32.mrb[0].mxu0
  %329 = vmatprep.mubr.f32.mxu0 0.0
  %330 = vmatmul.mubr.f32.gmra.mrb[0].mxu0 %v258
  %v331 = vpop.f32.mrb[0].mxu0
  %v332 = vadd.f32 %v251, %v331
  %v333 = vpop.f32.mrb[0].mxu0
  %334 = vdwg.mxu0
  %v335 = vmax.f32 %v327, 0.0
  %v336 = vmax.f32 %v332, 0.0
  %v337 = vld [vmem:[%s7] sm:$0xff]
  %v338 = vld [vmem:[%s7 + $0x8] sm:$0xff]
  %v339 = vld [vmem:[%s7 + $0x10] sm:$0xff]
  %v340 = vld [vmem:[%s7 + $0x18] sm:$0xff]
  %v341 = vld [vmem:[%s7 + $0x20] sm:$0xff]
  %v342 = vld [vmem:[%s7 + $0x28] sm:$0xff]
  %v343 = vld [vmem:[%s7 + $0x30] sm:$0xff]
  %v344 = vld [vmem:[%s7 + $0x38] sm:$0xff]
  %v345 = vld [vmem:[%s7 + $0x40] sm:$0xff]
  %v346 = vld [vmem:[%s7 + $0x48] sm:$0xff]
  %v347 = vld [vmem:[%s7 + $0x50] sm:$0xff]
  %v348 = vld [vmem:[%s7 + $0x58] sm:$0xff]
  %v349 = vld [vmem:[%s7 + $0x60] sm:$0xff]
  %v350 = vld [vmem:[%s7 + $0x68] sm:$0xff]
  %v351 = vld [vmem:[%s7 + $0x70] sm:$0xff]
  %v352 = vld [vmem:[%s7 + $0x78] sm:$0xff]
  %v353 = vld [vmem:[%s8] sm:$0xff]
  %v354 = vld [vmem:[%s8 + $0x8] sm:$0xff]
  %v355 = vld [vmem:[%s8 + $0x10] sm:$0xff]
  %v356 = vld [vmem:[%s8 + $0x18] sm:$0xff]
  %v357 = vld [vmem:[%s8 + $0x20] sm:$0xff]
  %v358 = vld [vmem:[%s8 + $0x28] sm:$0xff]
  %v359 = vld [vmem:[%s8 + $0x30] sm:$0xff]
  %v360 = vld [vmem:[%s8 + $0x38] sm:$0xff]
  %v362 = vsel %vm253, %v335, 0
  %v365 = vsel %vm253, %v336, 0
  %367 = vmatprep.subr.mxu0 0.0
  %368 = vmatpush1.msra.mxu0 %v353
  %369 = vmatprep.subr.mxu0 0.0
  %370 = vmatpush1.msra.mxu0 %v354
  %371 = vmatprep.subr.mxu0 0.0
  %372 = vmatpush1.msra.mxu0 %v355
  %373 = vmatprep.subr.mxu0 0.0
  %374 = vmatpush1.msra.mxu0 %v356
  %375 = vmatprep.subr.mxu0 0.0
  %376 = vmatpush1.msra.mxu0 %v357
  %377 = vmatprep.subr.mxu0 0.0
  %378 = vmatpush1.msra.mxu0 %v358
  %379 = vmatprep.subr.mxu0 0.0
  %380 = vmatpush1.msra.mxu0 %v359
  %381 = vmatprep.subr.mxu0 0.0
  %382 = vmatpush1.msra.mxu0 %v360
  %383 = vmatprep.subr.mxu0 0.0
  %384 = vmatpush1.msra.mxu0 0.0
  %385 = vmatprep.subr.mxu0 0.0
  %386 = vmatpush1.msra.mxu0 0.0
  %387 = vmatprep.subr.mxu0 0.0
  %388 = vmatpush1.msra.mxu0 0.0
  %389 = vmatprep.subr.mxu0 0.0
  %390 = vmatpush1.msra.mxu0 0.0
  %391 = vmatprep.subr.mxu0 0.0
  %392 = vmatpush1.msra.mxu0 0.0
  %393 = vmatprep.subr.mxu0 0.0
  %394 = vmatpush1.msra.mxu0 0.0
  %395 = vmatprep.subr.mxu0 0.0
  %396 = vmatpush1.msra.mxu0 0.0
  %397 = vmatprep.subr.mxu0 0.0
  %398 = vmatpush1.msra.mxu0 0.0
  %399 = vmatprep.subr.mxu0 0.0
  %400 = vmatpush1.msra.mxu0 0.0
  %401 = vmatprep.subr.mxu0 0.0
  %402 = vmatpush1.msra.mxu0 0.0
  %403 = vmatprep.subr.mxu0 0.0
  %404 = vmatpush1.msra.mxu0 0.0
  %405 = vmatprep.subr.mxu0 0.0
  %406 = vmatpush1.msra.mxu0 0.0
  %407 = vmatprep.subr.mxu0 0.0
  %408 = vmatpush1.msra.mxu0 0.0
  %409 = vmatprep.subr.mxu0 0.0
  %410 = vmatpush1.msra.mxu0 0.0
  %411 = vmatprep.subr.mxu0 0.0
  %412 = vmatpush1.msra.mxu0 0.0
  %413 = vmatprep.subr.mxu0 0.0
  %414 = vmatpush1.msra.mxu0 0.0
  %415 = vmatprep.subr.mxu0 0.0
  %416 = vmatpush1.msra.mxu0 0.0
  %417 = vmatprep.subr.mxu0 0.0
  %418 = vmatpush1.msra.mxu0 0.0
  %419 = vmatprep.subr.mxu0 0.0
  %420 = vmatpush1.msra.mxu0 0.0
  %421 = vmatprep.subr.mxu0 0.0
  %422 = vmatpush1.msra.mxu0 0.0
  %423 = vmatprep.subr.mxu0 0.0
  %424 = vmatpush1.msra.mxu0 0.0
  %425 = vmatprep.subr.mxu0 0.0
  %426 = vmatpush1.msra.mxu0 0.0
  %427 = vmatprep.subr.mxu0 0.0
  %428 = vmatpush1.msra.mxu0 0.0
  %429 = vmatprep.subr.mxu0 0.0
  %430 = vmatpush1.msra.mxu0 0.0
  %431 = vmatprep.mubr.f32.mxu0 0.0
  %432 = vmatmul.mubr.f32.gmra.mrb[0].mxu0 %v362
  %v433 = vpop.f32.mrb[0].mxu0
  %v434 = vadd.f32 0.0, %v433
  %v435 = vpop.f32.mrb[0].mxu0
  %436 = vmatprep.mubr.f32.mxu0 0.0
  %437 = vmatmul.mubr.f32.gmra.mrb[0].mxu0 %v365
  %v438 = vpop.f32.mrb[0].mxu0
  %v439 = vadd.f32 0.0, %v438
  %v440 = vpop.f32.mrb[0].mxu0
  %441 = vdwg.mxu0
  %442 = vmatprep.subr.mxu0 0.0
  %443 = vmatpush1.msra.mxu0 %v337
  %444 = vmatprep.subr.mxu0 0.0
  %445 = vmatpush1.msra.mxu0 %v338
  %446 = vmatprep.subr.mxu0 0.0
  %447 = vmatpush1.msra.mxu0 %v339
  %448 = vmatprep.subr.mxu0 0.0
  %449 = vmatpush1.msra.mxu0 %v340
  %450 = vmatprep.subr.mxu0 0.0
  %451 = vmatpush1.msra.mxu0 %v341
  %452 = vmatprep.subr.mxu0 0.0
  %453 = vmatpush1.msra.mxu0 %v342
  %454 = vmatprep.subr.mxu0 0.0
  %455 = vmatpush1.msra.mxu0 %v343
  %456 = vmatprep.subr.mxu0 0.0
  %457 = vmatpush1.msra.mxu0 %v344
  %458 = vmatprep.subr.mxu0 0.0
  %459 = vmatpush1.msra.mxu0 %v345
  %460 = vmatprep.subr.mxu0 0.0
  %461 = vmatpush1.msra.mxu0 %v346
  %462 = vmatprep.subr.mxu0 0.0
  %463 = vmatpush1.msra.mxu0 %v347
  %464 = vmatprep.subr.mxu0 0.0
  %465 = vmatpush1.msra.mxu0 %v348
  %466 = vmatprep.subr.mxu0 0.0
  %467 = vmatpush1.msra.mxu0 %v349
  %468 = vmatprep.subr.mxu0 0.0
  %469 = vmatpush1.msra.mxu0 %v350
  %470 = vmatprep.subr.mxu0 0.0
  %471 = vmatpush1.msra.mxu0 %v351
  %472 = vmatprep.subr.mxu0 0.0
  %473 = vmatpush1.msra.mxu0 %v352
  %474 = vmatprep.subr.mxu0 0.0
  %475 = vmatpush1.msra.mxu0 0.0
  %476 = vmatprep.subr.mxu0 0.0
  %477 = vmatpush1.msra.mxu0 0.0
  %478 = vmatprep.subr.mxu0 0.0
  %479 = vmatpush1.msra.mxu0 0.0
  %480 = vmatprep.subr.mxu0 0.0
  %481 = vmatpush1.msra.mxu0 0.0
  %482 = vmatprep.subr.mxu0 0.0
  %483 = vmatpush1.msra.mxu0 0.0
  %484 = vmatprep.subr.mxu0 0.0
  %485 = vmatpush1.msra.mxu0 0.0
  %486 = vmatprep.subr.mxu0 0.0
  %487 = vmatpush1.msra.mxu0 0.0
  %488 = vmatprep.subr.mxu0 0.0
  %489 = vmatpush1.msra.mxu0 0.0
  %490 = vmatprep.subr.mxu0 0.0
  %491 = vmatpush1.msra.mxu0 0.0
  %492 = vmatprep.subr.mxu0 0.0
  %493 = vmatpush1.msra.mxu0 0.0
  %494 = vmatprep.subr.mxu0 0.0
  %495 = vmatpush1.msra.mxu0 0.0
  %496 = vmatprep.subr.mxu0 0.0
  %497 = vmatpush1.msra.mxu0 0.0
  %498 = vmatprep.subr.mxu0 0.0
  %499 = vmatpush1.msra.mxu0 0.0
  %500 = vmatprep.subr.mxu0 0.0
  %501 = vmatpush1.msra.mxu0 0.0
  %502 = vmatprep.subr.mxu0 0.0
  %503 = vmatpush1.msra.mxu0 0.0
  %504 = vmatprep.subr.mxu0 0.0
  %505 = vmatpush1.msra.mxu0 0.0
  %506 = vmatprep.mubr.f32.mxu0 0.0
  %507 = vmatmul.mubr.f32.gmra.mrb[0].mxu0 %v136
  %v508 = vpop.f32.mrb[0].mxu0
  %v509 = vadd.f32 %v434, %v508
  %v510 = vpop.f32.mrb[0].mxu0
  %511 = vmatprep.mubr.f32.mxu0 0.0
  %512 = vmatmul.mubr.f32.gmra.mrb[0].mxu0 %v137
  %v513 = vpop.f32.mrb[0].mxu0
  %v514 = vadd.f32 %v439, %v513
  %v515 = vpop.f32.mrb[0].mxu0
  %516 = vdwg.mxu0
  %v517 = vld [vmem:[%s9] sm:$0x1]
  %v519 = vlaneseq
  %v520 = vshrl.u32 %v519, 7
  %v521 = vsub.s32 0, %v520
  %v522 = vrot.slane %v517, %v521
  %v524 = vadd.f32 %v509, %v522
  %v525 = vadd.f32 %v514, %v522
  %v526 = vmax.f32 %v524, 0.0
  %v527 = vmax.f32 %v525, 0.0
  %v528 = vld [vmem:[%s10] sm:$0xff]
  %v529 = vld [vmem:[%s10 + $0x8] sm:$0xff]
  %v530 = vld [vmem:[%s11] sm:$0x1]
  %v532 = vlaneseq
  %v533 = vshrl.u32 %v532, 7
  %v534 = vsub.s32 0, %v533
  %v535 = vrot.slane %v530, %v534
  %vm537 = vcmask 130048
  %v539 = vsel %vm537, %v526, 0
  %v542 = vsel %vm537, %v527, 0
  %544 = vmatprep.subr.mxu0 0.0
  %545 = vmatpush1.msra.mxu0 %v528
  %546 = vmatprep.subr.mxu0 0.0
  %547 = vmatpush1.msra.mxu0 %v529
  %548 = vmatprep.subr.mxu0 0.0
  %549 = vmatpush1.msra.mxu0 0.0
  %550 = vmatprep.subr.mxu0 0.0
  %551 = vmatpush1.msra.mxu0 0.0
  %552 = vmatprep.subr.mxu0 0.0
  %553 = vmatpush1.msra.mxu0 0.0
  %554 = vmatprep.subr.mxu0 0.0
  %555 = vmatpush1.msra.mxu0 0.0
  %556 = vmatprep.subr.mxu0 0.0
  %557 = vmatpush1.msra.mxu0 0.0
  %558 = vmatprep.subr.mxu0 0.0
  %559 = vmatpush1.msra.mxu0 0.0
  %560 = vmatprep.subr.mxu0 0.0
  %561 = vmatpush1.msra.mxu0 0.0
  %562 = vmatprep.subr.mxu0 0.0
  %563 = vmatpush1.msra.mxu0 0.0
  %564 = vmatprep.subr.mxu0 0.0
  %565 = vmatpush1.msra.mxu0 0.0
  %566 = vmatprep.subr.mxu0 0.0
  %567 = vmatpush1.msra.mxu0 0.0
  %568 = vmatprep.subr.mxu0 0.0
  %569 = vmatpush1.msra.mxu0 0.0
  %570 = vmatprep.subr.mxu0 0.0
  %571 = vmatpush1.msra.mxu0 0.0
  %572 = vmatprep.subr.mxu0 0.0
  %573 = vmatpush1.msra.mxu0 0.0
  %574 = vmatprep.subr.mxu0 0.0
  %575 = vmatpush1.msra.mxu0 0.0
  %576 = vmatprep.subr.mxu0 0.0
  %577 = vmatpush1.msra.mxu0 0.0
  %578 = vmatprep.subr.mxu0 0.0
  %579 = vmatpush1.msra.mxu0 0.0
  %580 = vmatprep.subr.mxu0 0.0
  %581 = vmatpush1.msra.mxu0 0.0
  %582 = vmatprep.subr.mxu0 0.0
  %583 = vmatpush1.msra.mxu0 0.0
  %584 = vmatprep.subr.mxu0 0.0
  %585 = vmatpush1.msra.mxu0 0.0
  %586 = vmatprep.subr.mxu0 0.0
  %587 = vmatpush1.msra.mxu0 0.0
  %588 = vmatprep.subr.mxu0 0.0
  %589 = vmatpush1.msra.mxu0 0.0
  %590 = vmatprep.subr.mxu0 0.0
  %591 = vmatpush1.msra.mxu0 0.0
  %592 = vmatprep.subr.mxu0 0.0
  %593 = vmatpush1.msra.mxu0 0.0
  %594 = vmatprep.subr.mxu0 0.0
  %595 = vmatpush1.msra.mxu0 0.0
  %596 = vmatprep.subr.mxu0 0.0
  %597 = vmatpush1.msra.mxu0 0.0
  %598 = vmatprep.subr.mxu0 0.0
  %599 = vmatpush1.msra.mxu0 0.0
  %600 = vmatprep.subr.mxu0 0.0
  %601 = vmatpush1.msra.mxu0 0.0
  %602 = vmatprep.subr.mxu0 0.0
  %603 = vmatpush1.msra.mxu0 0.0
  %604 = vmatprep.subr.mxu0 0.0
  %605 = vmatpush1.msra.mxu0 0.0
  %606 = vmatprep.subr.mxu0 0.0
  %607 = vmatpush1.msra.mxu0 0.0
  %608 = vmatprep.mubr.f32.mxu0 0.0
  %609 = vmatmul.mubr.f32.gmra.mrb[0].mxu0 %v539
  %v610 = vpop.f32.mrb[0].mxu0
  %v611 = vadd.f32 %v535, %v610
  %v612 = vpop.f32.mrb[0].mxu0
  %613 = vmatprep.mubr.f32.mxu0 0.0
  %614 = vmatmul.mubr.f32.gmra.mrb[0].mxu0 %v542
  %v615 = vpop.f32.mrb[0].mxu0
  %v616 = vadd.f32 %v535, %v615
  %v617 = vpop.f32.mrb[0].mxu0
  %618 = vdwg.mxu0
  %619 = vst [vmem:[%s12] sm:$0xff] %v611
  %620 = vst [vmem:[%s12 + $0x8] sm:$0xff] %v616
  // Predicated region
  $region50: #{my_model_pallas.1} parent=0 // pred_check
    _
  $region51: #{my_model_pallas.1} parent=0 // pred_check_branch
    %622 = sbr.rel (0) target = $region53
  $region52: #{my_model_pallas.1} parent=0 // pred_region
    _
  $region53: #{my_model_pallas.1} parent=0 // pred_fallthru
    _
  // Predicated region
  $region54: #{my_model_pallas.1} parent=0 // pred_check
    _
  $region55: #{my_model_pallas.1} parent=0 // pred_check_branch
    %624 = sbr.rel (0) target = $region57
  $region56: #{my_model_pallas.1} parent=0 // pred_region
    _
  $region57: #{my_model_pallas.1} parent=0 // pred_fallthru
    _

</llo_original>
